<compile_context>
chip_gen: v7x
topology: tpu7x:2x2x1
jax: 0.10.0
libtpu: 0.0.40
codegen_flags: <defaults>
</compile_context>

<pallas_src>
import numpy as np
import jax
import jax.numpy as jnp
from jax import lax
from jax.experimental import pallas as pl
from jax.experimental.pallas import tpu as pltpu


# ---------------------------------------------------------------------------
# Pallas kernels
# ---------------------------------------------------------------------------
def conv1_pool_kernel(p_ref, w_ref, b_ref, o_ref):
    """C1 + ReLU + 2x2 max-pool for one batch tile, channel-major output.

    p_ref : (1, 4, 25, TBN)  patches; axis 1 = pool-window offset (di,dj),
                             axis 2 = 5x5 tap, lane = b_in_tile*196 + out_pos
    w_ref : (6, 25)          C1 weights (Cin=1)
    b_ref : (6, 1)           C1 bias
    o_ref : (1, 6, TBN)      pooled activations, channel-major (lane-dense)
    """
    p = p_ref[0]                                                 # (4, 25, TBN)
    z = jnp.dot(w_ref[...], p[0], preferred_element_type=jnp.float32)
    for s in range(1, 4):
        z = jnp.maximum(z, jnp.dot(w_ref[...], p[s],
                                   preferred_element_type=jnp.float32))
    # relu(max_s(conv_s) + b) == max_s(relu(conv_s + b)):
    # bias + ReLU are applied once, after the pooling max.
    o_ref[0] = jnp.maximum(z + b_ref[...], 0.0)                  # (6, TBN)


def conv2_mlp_kernel(p_ref, w2_ref, b2_ref, a5_ref, b5_ref,
                     w6_ref, b6_ref, wo_ref, bo_ref, o_ref):
    """C3 + ReLU + 2x2 max-pool + F5 + F6 + OUTPUT for one batch tile.

    p_ref  : (1, 100, TB, 150)  patches; axis 1 = pool_offset*25 + pooled_pos,
                                last axis flattened (c, ki, kj)
    w2_ref : (25, 150, 16)      C3 weights broadcast over 25 pooled positions
    b2_ref : (1, 16)
    a5_ref : (25, 16, 120)      F5 weights regrouped per pooled position
                                (folds the PyTorch .view flatten into weights)
    b5_ref : (1, 120)
    w6_ref : (120, 84), b6_ref: (1, 84)
    wo_ref : (84, 10),  bo_ref: (1, 10)
    o_ref  : (1, TB, 10)        logits
    """
    p = p_ref[0]                                                 # (100, TB, 150)

    def conv_slab(s):                                            # one pool offset
        return lax.dot_general(
            p[s * 25:(s + 1) * 25], w2_ref[...],
            dimension_numbers=(((2,), (1,)), ((0,), (0,))),
            preferred_element_type=jnp.float32)                  # (25, TB, 16)

    # 2x2 max-pool = elementwise max of the 4 offset slabs (VPU).
    z = jnp.maximum(jnp.maximum(conv_slab(0), conv_slab(1)),
                    jnp.maximum(conv_slab(2), conv_slab(3)))
    z = jnp.maximum(z + b2_ref[...], 0.0)                        # (25, TB, 16)

    # F5: h[b, f] = sum_q  z[q, b, :] @ a5[q, :, :]
    hq = lax.dot_general(z, a5_ref[...],
                         dimension_numbers=(((2,), (1,)), ((0,), (0,))),
                         preferred_element_type=jnp.float32)     # (25, TB, 120)
    h = hq[0]
    for q in range(1, 25):
        h = h + hq[q]
    h = jnp.maximum(h + b5_ref[...], 0.0)                        # (TB, 120)

    h = jnp.maximum(jnp.dot(h, w6_ref[...],
                            preferred_element_type=jnp.float32) + b6_ref[...],
                    0.0)                                         # (TB, 84)
    o_ref[0] = jnp.dot(h, wo_ref[...],
                       preferred_element_type=jnp.float32) + bo_ref[...]


# ---------------------------------------------------------------------------
# Wrapper glue (plain JAX: patch extraction / weight permutation only)
# ---------------------------------------------------------------------------
def _batch_tile(batch):
    """Largest tile in {8,4,2,1} that divides `batch` and leaves >=2 grid
    steps (so v7x dual-TC / megacore gets parallel work); else whole batch."""
    for tb in (8, 4, 2, 1):
        if batch % tb == 0 and batch // tb >= 2:
            return tb
    return batch


def _conv1_patches(x, n_tiles, tb):
    """(B,1,32,32) -> (n_tiles, 4, 25, TB*196), grouped by 2x2 pool offset."""
    b = x.shape[0]
    xs = x.reshape(b, 32, 32)
    slabs = []
    for di in range(2):
        for dj in range(2):
            taps = []
            for ki in range(5):
                for kj in range(5):
                    sl = xs[:, di + ki:di + ki + 28:2, dj + kj:dj + kj + 28:2]
                    taps.append(sl.reshape(b, 196))              # (B, 196)
            slabs.append(jnp.stack(taps, axis=0))                # (25, B, 196)
    p = jnp.stack(slabs, axis=0)                                 # (4, 25, B, 196)
    p = p.reshape(4, 25, n_tiles, tb, 196)
    return p.transpose(2, 0, 1, 3, 4).reshape(n_tiles, 4, 25, tb * 196)


def _conv2_patches(y1, n_tiles, tb):
    """(n_tiles,6,TB,14,14) -> (n_tiles, 100, TB, 150).
    axis 1 = pool_offset*25 + pooled_pos; last axis flattened (c, ki, kj)."""
    slabs = []
    for du in range(2):
        for dv in range(2):
            taps = []
            for ki in range(5):
                for kj in range(5):
                    sl = y1[:, :, :, du + ki:du + ki + 10:2,
                            dv + kj:dv + kj + 10:2]              # (nt,6,TB,5,5)
                    taps.append(sl.reshape(n_tiles, 6, tb, 25))
            slabs.append(jnp.stack(taps, axis=2))                # (nt,6,25,TB,25)
    p = jnp.stack(slabs, axis=1)                                 # (nt,4,6,25,TB,25)
    p = p.transpose(0, 1, 5, 4, 2, 3)                            # (nt,4,25,TB,6,25)
    return p.reshape(n_tiles, 100, tb, 150)


# ---------------------------------------------------------------------------
# pallas_call wrappers
# ---------------------------------------------------------------------------
def conv1_pool_stage(p1, w1f, b1, n_tiles, tbn):
    return pl.pallas_call(
        conv1_pool_kernel,
        out_shape=jax.ShapeDtypeStruct((n_tiles, 6, tbn), jnp.float32),
        grid=(n_tiles,),
        in_specs=[
            pl.BlockSpec((1, 4, 25, tbn), lambda t: (t, 0, 0, 0)),
            pl.BlockSpec((6, 25), lambda t: (0, 0)),
            pl.BlockSpec((6, 1), lambda t: (0, 0)),
        ],
        out_specs=pl.BlockSpec((1, 6, tbn), lambda t: (t, 0, 0)),
        compiler_params=pltpu.CompilerParams(dimension_semantics=("parallel",)),
    )(p1, w1f, b1)


def conv2_mlp_stage(p2, a2, b2, a5, b5, w6t, b6, wot, bo, n_tiles, tb):
    return pl.pallas_call(
        conv2_mlp_kernel,
        out_shape=jax.ShapeDtypeStruct((n_tiles, tb, 10), jnp.float32),
        grid=(n_tiles,),
        in_specs=[
            pl.BlockSpec((1, 100, tb, 150), lambda t: (t, 0, 0, 0)),
            pl.BlockSpec((25, 150, 16), lambda t: (0, 0, 0)),
            pl.BlockSpec((1, 16), lambda t: (0, 0)),
            pl.BlockSpec((25, 16, 120), lambda t: (0, 0, 0)),
            pl.BlockSpec((1, 120), lambda t: (0, 0)),
            pl.BlockSpec((120, 84), lambda t: (0, 0)),
            pl.BlockSpec((1, 84), lambda t: (0, 0)),
            pl.BlockSpec((84, 10), lambda t: (0, 0)),
            pl.BlockSpec((1, 10), lambda t: (0, 0)),
        ],
        out_specs=pl.BlockSpec((1, tb, 10), lambda t: (t, 0, 0)),
        compiler_params=pltpu.CompilerParams(dimension_semantics=("parallel",)),
    )(p2, a2, b2, a5, b5, w6t, b6, wot, bo)


def lenet5_forward(x, params):
    """x: (B, 1, 32, 32) float32 -> (B, 10) float32."""
    w1, b1, w2, b2, w5, b5, w6, b6, wo, bo = params
    batch = x.shape[0]
    tb = _batch_tile(batch)
    n_tiles = batch // tb
    tbn = tb * 196

    # C1 + ReLU + maxpool 2x2 : 32 -> 28 -> 14    (kernel A)
    p1 = _conv1_patches(x, n_tiles, tb)                      # (nt, 4, 25, TB*196)
    y1t = conv1_pool_stage(p1, w1.reshape(6, 25), b1.reshape(6, 1),
                           n_tiles, tbn)                     # (nt, 6, TB*196)
    y1 = y1t.reshape(n_tiles, 6, tb, 14, 14)                 # free reshape

    # C3 + ReLU + maxpool 2x2 + F5 + F6 + OUTPUT  (kernel B, fully fused)
    p2 = _conv2_patches(y1, n_tiles, tb)                     # (nt, 100, TB, 150)
    a2 = jnp.broadcast_to(w2.reshape(16, 150).T, (25, 150, 16))
    a5 = w5.reshape(120, 16, 25).transpose(2, 1, 0)          # (25, 16, 120)
    out = conv2_mlp_stage(p2, a2, b2.reshape(1, 16), a5, b5.reshape(1, 120),
                          w6.T, b6.reshape(1, 84), wo.T, bo.reshape(1, 10),
                          n_tiles, tb)                       # (nt, TB, 10)
    return out.reshape(batch, 10)


# ---------------------------------------------------------------------------
# Pure-JAX reference (for correctness check)
# ---------------------------------------------------------------------------
def lenet5_reference(x, params):
    w1, b1, w2, b2, w5, b5, w6, b6, wo, bo = params
    dn = ("NCHW", "OIHW", "NCHW")
    hp = lax.Precision.HIGHEST

    y = lax.conv_general_dilated(x, w1, (1, 1), "VALID", dimension_numbers=dn,
                                 precision=hp) + b1[None, :, None, None]
    y = jax.nn.relu(y)
    y = lax.reduce_window(y, -jnp.inf, lax.max, (1, 1, 2, 2), (1, 1, 2, 2), "VALID")
    y = lax.conv_general_dilated(y, w2, (1, 1), "VALID", dimension_numbers=dn,
                                 precision=hp) + b2[None, :, None, None]
    y = jax.nn.relu(y)
    y = lax.reduce_window(y, -jnp.inf, lax.max, (1, 1, 2, 2), (1, 1, 2, 2), "VALID")
    y = y.reshape(y.shape[0], -1)
    y = jax.nn.relu(jnp.dot(y, w5.T, precision=hp) + b5)
    y = jax.nn.relu(jnp.dot(y, w6.T, precision=hp) + b6)
    return jnp.dot(y, wo.T, precision=hp) + bo


# ---------------------------------------------------------------------------
def init_params(key):
    ks = jax.random.split(key, 10)
    def w(k, shape, fan_in):
        return (jax.random.normal(k, shape, jnp.float32) / np.sqrt(fan_in)).astype(jnp.float32)
    w1 = w(ks[0], (6, 1, 5, 5), 25)
    b1 = w(ks[1], (6,), 25)
    w2 = w(ks[2], (16, 6, 5, 5), 150)
    b2 = w(ks[3], (16,), 150)
    w5 = w(ks[4], (120, 400), 400)
    b5 = w(ks[5], (120,), 400)
    w6 = w(ks[6], (84, 120), 120)
    b6 = w(ks[7], (84,), 120)
    wo = w(ks[8], (10, 84), 84)
    bo = w(ks[9], (10,), 84)
    return (w1, b1, w2, b2, w5, b5, w6, b6, wo, bo)


if __name__ == "__main__":
    key = jax.random.PRNGKey(0)
    k_x, k_p = jax.random.split(key)
    # LeNet-5 geometry requires 32x32 inputs (16*5*5 = 400 flat features).
    x = jax.random.normal(k_x, (2, 1, 32, 32), jnp.float32)
    params = init_params(k_p)

    out = lenet5_forward(x, params)
    out = jax.block_until_ready(out)
    assert out.shape == (2, 10) and out.dtype == jnp.float32

    ref = jax.block_until_ready(lenet5_reference(x, params))
    np.testing.assert_allclose(np.asarray(out), np.asarray(ref), rtol=1e-3, atol=1e-3)

    print("KERNEL_OK")
</pallas_src>

<mosaic_0001>
module attributes {stable_mosaic.version = 11 : i64} {
  func.func @conv1_pool_kernel(%arg0: i32, %arg1: memref<1x4x25x196xf32, #tpu.memory_space<vmem>>, %arg2: memref<6x25xf32, #tpu.memory_space<vmem>>, %arg3: memref<6x1xf32, #tpu.memory_space<vmem>>, %arg4: memref<1x6x196xf32, #tpu.memory_space<vmem>>) attributes {dimension_semantics = [#tpu.dimension_semantics<parallel>], iteration_bounds = array<i64: 2>, scalar_prefetch = 0 : i64, scratch_operands = 0 : i64, tpu.core_type = #tpu.core_type<tc>, window_params = [{transform_indices = @transform_0, window_bounds = array<i64: 1, 4, 25, 196>}, {pipeline_mode = #tpu.pipeline_mode<synchronous>, transform_indices = @transform_1, window_bounds = array<i64: 6, 25>}, {pipeline_mode = #tpu.pipeline_mode<synchronous>, transform_indices = @transform_2, window_bounds = array<i64: 6, 1>}, {transform_indices = @transform_3, window_bounds = array<i64: 1, 6, 196>}]} {
    %c0 = arith.constant 0 : index
    %c0_0 = arith.constant 0 : index
    %c0_1 = arith.constant 0 : index
    %c0_2 = arith.constant 0 : index
    %0 = vector.load %arg1[%c0, %c0_0, %c0_1, %c0_2] : memref<1x4x25x196xf32, #tpu.memory_space<vmem>>, vector<1x4x25x196xf32>
    %1 = vector.shape_cast %0 : vector<1x4x25x196xf32> to vector<4x25x196xf32>
    %c0_3 = arith.constant 0 : index
    %c0_4 = arith.constant 0 : index
    %2 = vector.load %arg2[%c0_3, %c0_4] : memref<6x25xf32, #tpu.memory_space<vmem>>, vector<6x25xf32>
    %3 = vector.extract_strided_slice %1 {offsets = [0, 0, 0], sizes = [1, 25, 196], strides = [1, 1, 1]} : vector<4x25x196xf32> to vector<1x25x196xf32>
    %4 = vector.shape_cast %3 : vector<1x25x196xf32> to vector<25x196xf32>
    %cst = arith.constant dense<0.000000e+00> : vector<6x196xf32>
    %5 = tpu.matmul %2, %4, %cst {dimension_numbers = #tpu.dot_dimension_numbers<[1], [0], [0], [1], [0, 0, 1, 1], [], []>} : vector<6x25xf32>, vector<25x196xf32>, vector<6x196xf32> -> vector<6x196xf32>
    %c0_5 = arith.constant 0 : index
    %c0_6 = arith.constant 0 : index
    %6 = vector.load %arg2[%c0_5, %c0_6] : memref<6x25xf32, #tpu.memory_space<vmem>>, vector<6x25xf32>
    %7 = vector.extract_strided_slice %1 {offsets = [1, 0, 0], sizes = [1, 25, 196], strides = [1, 1, 1]} : vector<4x25x196xf32> to vector<1x25x196xf32>
    %8 = vector.shape_cast %7 : vector<1x25x196xf32> to vector<25x196xf32>
    %cst_7 = arith.constant dense<0.000000e+00> : vector<6x196xf32>
    %9 = tpu.matmul %6, %8, %cst_7 {dimension_numbers = #tpu.dot_dimension_numbers<[1], [0], [0], [1], [0, 0, 1, 1], [], []>} : vector<6x25xf32>, vector<25x196xf32>, vector<6x196xf32> -> vector<6x196xf32>
    %10 = arith.maximumf %5, %9 : vector<6x196xf32>
    %c0_8 = arith.constant 0 : index
    %c0_9 = arith.constant 0 : index
    %11 = vector.load %arg2[%c0_8, %c0_9] : memref<6x25xf32, #tpu.memory_space<vmem>>, vector<6x25xf32>
    %12 = vector.extract_strided_slice %1 {offsets = [2, 0, 0], sizes = [1, 25, 196], strides = [1, 1, 1]} : vector<4x25x196xf32> to vector<1x25x196xf32>
    %13 = vector.shape_cast %12 : vector<1x25x196xf32> to vector<25x196xf32>
    %cst_10 = arith.constant dense<0.000000e+00> : vector<6x196xf32>
    %14 = tpu.matmul %11, %13, %cst_10 {dimension_numbers = #tpu.dot_dimension_numbers<[1], [0], [0], [1], [0, 0, 1, 1], [], []>} : vector<6x25xf32>, vector<25x196xf32>, vector<6x196xf32> -> vector<6x196xf32>
    %15 = arith.maximumf %10, %14 : vector<6x196xf32>
    %c0_11 = arith.constant 0 : index
    %c0_12 = arith.constant 0 : index
    %16 = vector.load %arg2[%c0_11, %c0_12] : memref<6x25xf32, #tpu.memory_space<vmem>>, vector<6x25xf32>
    %17 = vector.extract_strided_slice %1 {offsets = [3, 0, 0], sizes = [1, 25, 196], strides = [1, 1, 1]} : vector<4x25x196xf32> to vector<1x25x196xf32>
    %18 = vector.shape_cast %17 : vector<1x25x196xf32> to vector<25x196xf32>
    %cst_13 = arith.constant dense<0.000000e+00> : vector<6x196xf32>
    %19 = tpu.matmul %16, %18, %cst_13 {dimension_numbers = #tpu.dot_dimension_numbers<[1], [0], [0], [1], [0, 0, 1, 1], [], []>} : vector<6x25xf32>, vector<25x196xf32>, vector<6x196xf32> -> vector<6x196xf32>
    %20 = arith.maximumf %15, %19 : vector<6x196xf32>
    %c0_14 = arith.constant 0 : index
    %c0_15 = arith.constant 0 : index
    %21 = vector.load %arg3[%c0_14, %c0_15] : memref<6x1xf32, #tpu.memory_space<vmem>>, vector<6x1xf32>
    %22 = vector.broadcast %21 : vector<6x1xf32> to vector<6x196xf32>
    %23 = arith.addf %20, %22 : vector<6x196xf32>
    %cst_16 = arith.constant 0.000000e+00 : f32
    %24 = vector.broadcast %cst_16 : f32 to vector<6x196xf32>
    %25 = arith.maximumf %23, %24 : vector<6x196xf32>
    %c0_17 = arith.constant 0 : index
    %c0_18 = arith.constant 0 : index
    %c0_19 = arith.constant 0 : index
    %26 = vector.load %arg4[%c0_17, %c0_18, %c0_19] : memref<1x6x196xf32, #tpu.memory_space<vmem>>, vector<1x6x196xf32>
    %27 = vector.shape_cast %26 : vector<1x6x196xf32> to vector<6x196xf32>
    %28 = vector.shape_cast %25 : vector<6x196xf32> to vector<1x6x196xf32>
    tpu.vector_store %arg4[%c0_17, %c0_18, %c0_19], %28 {strides = array<i32>} : memref<1x6x196xf32, #tpu.memory_space<vmem>>, vector<1x6x196xf32>,
    return
  }
  func.func @transform_0(%arg0: i32) -> (i32, i32, i32, i32) {
    %c0_i32 = arith.constant 0 : i32
    %c0_i32_0 = arith.constant 0 : i32
    %c0_i32_1 = arith.constant 0 : i32
    %c0_i32_2 = arith.constant 0 : i32
    return %arg0, %c0_i32, %c0_i32_0, %c0_i32_1 : i32, i32, i32, i32
  }
  func.func @transform_1(%arg0: i32) -> (i32, i32) {
    %c0_i32 = arith.constant 0 : i32
    %c0_i32_0 = arith.constant 0 : i32
    %c0_i32_1 = arith.constant 0 : i32
    return %c0_i32, %c0_i32_0 : i32, i32
  }
  func.func @transform_2(%arg0: i32) -> (i32, i32) {
    %c0_i32 = arith.constant 0 : i32
    %c0_i32_0 = arith.constant 0 : i32
    %c0_i32_1 = arith.constant 0 : i32
    return %c0_i32, %c0_i32_0 : i32, i32
  }
  func.func @transform_3(%arg0: i32) -> (i32, i32, i32) {
    %c0_i32 = arith.constant 0 : i32
    %c0_i32_0 = arith.constant 0 : i32
    %c0_i32_1 = arith.constant 0 : i32
    return %arg0, %c0_i32, %c0_i32_0 : i32, i32, i32
  }
}

</mosaic_0001>

<llo_original>
// kernel: tpu_custom_call.1
$region0: #{tpu_custom_call.1}
  #allocation0 [shape = 'u32[]', space=smem, size = 0x4, offset = 0x4, fixed_abs, tag = 'smem constant byte address 0x4 - core index']
  #allocation1 [shape = 'u32[144,128]{1,0:T(1,128)}', space=vmem, size = 0x12000, scoped, tag = 'internal scratch']
  %s0 = inlined_call_operand.vmem [shape: f32[2,4,25,196], index: 0, kind: input, shape index: {}]
  %s1 = inlined_call_operand.vmem [shape: f32[6,25], index: 1, kind: input, shape index: {}]
  %s2 = inlined_call_operand.vmem [shape: f32[6,1], index: 2, kind: input, shape index: {}]
  %s3 = inlined_call_operand.vmem [shape: f32[2,6,196], index: 3, kind: output, shape index: {}]
  %s4 = sld [smem:[#allocation0]]
  $region45: #{tpu_custom_call.1} parent=0
    _
  %s6 = ssub.s32 1, %s4
  %s7 = scalar_select 0, %s6, %s4
  loop: start=0, step=1, limit=4
  $region2: #{tpu_custom_call.1} parent=0 // loop_pre_header
    _
  $region3: #{tpu_custom_call.1} parent=0 // loop_header
    %s9 = sphi 0, %s13
    %p10 = scmp.ge.s32.totalorder %s9, 4
    %s19 = sphi 0, %s21
    %s22 = sphi 0, %s19
    %s23 = sphi 0, %s22
    %s39 = sphi 0, %s23
    %s43 = sphi 0, %s43
    %s45 = sphi 0, %s43
    %s46 = sphi 0, %s45
    %s60 = sphi 0, %s46
    %s64 = sphi 0, %s64
    %s66 = sphi 0, %s64
    %s67 = sphi 0, %s66
    %s81 = sphi 0, %s67
    %s87 = sphi 0, %s89
    %s90 = sphi 0, %s87
    %s91 = sphi 0, %s90
    %s107 = sphi 0, %s91
  $region4: #{tpu_custom_call.1} parent=0 // loop_header_branch
    %12 = sbr.rel (%p10) target = $region8
  $region5: #{tpu_custom_call.1} parent=0 // loop_body
    %s14 = ssub.s32 %s9, 1
    %s15 = ssub.s32 %s9, 2
    %s16 = sadd.s32 %s9, 1
    %s17 = ssub.s32 %s9, %s16
    %p18 = scmp.eq.s32.totalorder %s17, 0
    %s20 = sadd.s32 %s19, 1
    %s21 = scalar_select %p18, %s19, %s20
    %p24 = pneg %p18
    %p25 = scmp.eq.s32.totalorder %s9, 1
    %p26 = por %p24, %p25
    %p27 = scmp.ne.s32.totalorder %s19, %s22
    %p28 = scmp.eq.s32.totalorder %s9, 0
    %p29 = por %p27, %p28
    %p30 = scmp.ne.s32.totalorder %s19, %s22
    %p31 = scmp.eq.s32.totalorder %s14, 1
    %p32 = por %p30, %p31
    %p33 = scmp.ne.s32.totalorder %s22, %s23
    %p34 = scmp.eq.s32.totalorder %s14, 0
    %p35 = por %p33, %p34
    %p36 = scmp.ne.s32.totalorder %s22, %s23
    %p37 = scmp.eq.s32.totalorder %s15, 1
    %p38 = por %p36, %p37
    %p40 = scmp.ne.s32.totalorder %s23, %s39
    %p41 = scmp.eq.s32.totalorder %s15, 0
    %p42 = por %p40, %p41
    %s44 = sadd.s32 %s43, 1
    %p47 = scmp.eq.s32.totalorder %s9, 1
    %p48 = scmp.ne.s32.totalorder %s43, %s45
    %p49 = scmp.eq.s32.totalorder %s9, 0
    %p50 = por %p48, %p49
    %p51 = scmp.ne.s32.totalorder %s43, %s45
    %p52 = scmp.eq.s32.totalorder %s14, 1
    %p53 = por %p51, %p52
    %p54 = scmp.ne.s32.totalorder %s45, %s46
    %p55 = scmp.eq.s32.totalorder %s14, 0
    %p56 = por %p54, %p55
    %p57 = scmp.ne.s32.totalorder %s45, %s46
    %p58 = scmp.eq.s32.totalorder %s15, 1
    %p59 = por %p57, %p58
    %p61 = scmp.ne.s32.totalorder %s46, %s60
    %p62 = scmp.eq.s32.totalorder %s15, 0
    %p63 = por %p61, %p62
    %s65 = sadd.s32 %s64, 1
    %p68 = scmp.eq.s32.totalorder %s9, 1
    %p69 = scmp.ne.s32.totalorder %s64, %s66
    %p70 = scmp.eq.s32.totalorder %s9, 0
    %p71 = por %p69, %p70
    %p72 = scmp.ne.s32.totalorder %s64, %s66
    %p73 = scmp.eq.s32.totalorder %s14, 1
    %p74 = por %p72, %p73
    %p75 = scmp.ne.s32.totalorder %s66, %s67
    %p76 = scmp.eq.s32.totalorder %s14, 0
    %p77 = por %p75, %p76
    %p78 = scmp.ne.s32.totalorder %s66, %s67
    %p79 = scmp.eq.s32.totalorder %s15, 1
    %p80 = por %p78, %p79
    %p82 = scmp.ne.s32.totalorder %s67, %s81
    %p83 = scmp.eq.s32.totalorder %s15, 0
    %p84 = por %p82, %p83
    %s85 = ssub.s32 %s9, %s16
    %p86 = scmp.eq.s32.totalorder %s85, 0
    %s88 = sadd.s32 %s87, 1
    %s89 = scalar_select %p86, %s87, %s88
    %p92 = pneg %p86
    %p93 = scmp.eq.s32.totalorder %s9, 1
    %p94 = por %p92, %p93
    %p95 = scmp.ne.s32.totalorder %s87, %s90
    %p96 = scmp.eq.s32.totalorder %s9, 0
    %p97 = por %p95, %p96
    %p98 = scmp.ne.s32.totalorder %s87, %s90
    %p99 = scmp.eq.s32.totalorder %s14, 1
    %p100 = por %p98, %p99
    %p101 = scmp.ne.s32.totalorder %s90, %s91
    %p102 = scmp.eq.s32.totalorder %s14, 0
    %p103 = por %p101, %p102
    %p104 = scmp.ne.s32.totalorder %s90, %s91
    %p105 = scmp.eq.s32.totalorder %s15, 1
    %p106 = por %p104, %p105
    %p108 = scmp.ne.s32.totalorder %s91, %s107
    %p109 = scmp.eq.s32.totalorder %s15, 0
    %p110 = por %p108, %p109
    %p111 = scmp.le.s32.totalorder 1, %s9
    %p112 = scmp.lt.s32.totalorder %s9, 3
    %p113 = pnand %p111, %p112
    %p114 = pneg %p113
    // Predicated region
    $region9: #{tpu_custom_call.1} parent=5 // pred_check
      _
    $region10: #{tpu_custom_call.1} parent=5 // pred_check_branch
      %116 = sbr.rel (%p113) target = $region12
    $region11: #{tpu_custom_call.1} parent=5 // pred_region
      %s117 = ssub.s32 %s9, 1
      // Predicated region
      $region13: #{tpu_custom_call.1} parent=11 // pred_check
        %p118 = pneg %p56
      $region14: #{tpu_custom_call.1} parent=11 // pred_check_branch
        %120 = sbr.rel (%p118) target = $region16
      $region15: #{tpu_custom_call.1} parent=11 // pred_region
        _
      $region16: #{tpu_custom_call.1} parent=11 // pred_fallthru
        _
      // Predicated region
      $region17: #{tpu_custom_call.1} parent=11 // pred_check
        %p121 = pneg %p77
      $region18: #{tpu_custom_call.1} parent=11 // pred_check_branch
        %123 = sbr.rel (%p121) target = $region20
      $region19: #{tpu_custom_call.1} parent=11 // pred_region
        _
      $region20: #{tpu_custom_call.1} parent=11 // pred_fallthru
        _
    $region12: #{tpu_custom_call.1} parent=5 // pred_fallthru
      _
    %p124 = scmp.lt.s32.totalorder %s9, 2
    // Predicated region
    $region21: #{tpu_custom_call.1} parent=5 // pred_check
      %p125 = pneg %p124
    $region22: #{tpu_custom_call.1} parent=5 // pred_check_branch
      %127 = sbr.rel (%p125) target = $region24
    $region23: #{tpu_custom_call.1} parent=5 // pred_region
      // Predicated region
      $region25: #{tpu_custom_call.1} parent=23 // pred_check
        %p128 = pneg %p29
      $region26: #{tpu_custom_call.1} parent=23 // pred_check_branch
        %130 = sbr.rel (%p128) target = $region28
      $region27: #{tpu_custom_call.1} parent=23 // pred_region
        %p131 = scmp.lt.s32.totalorder %s9, 1
        %s132 = scalar_select %p131, %s9, 1
        %s133 = smul.addr %s132, 32
        %s134 = smul.addr %s133, 8
        %s135 = scalar_lea.vmem %s0, %s134
      $region28: #{tpu_custom_call.1} parent=23 // pred_fallthru
        _
    $region24: #{tpu_custom_call.1} parent=5 // pred_fallthru
      _
    %p136 = scmp.le.s32.totalorder 1, %s9
    %p137 = scmp.lt.s32.totalorder %s9, 3
    %p138 = pnand %p136, %p137
    %p139 = pneg %p138
    // Predicated region
    $region29: #{tpu_custom_call.1} parent=5 // pred_check
      _
    $region30: #{tpu_custom_call.1} parent=5 // pred_check_branch
      %141 = sbr.rel (%p138) target = $region32
    $region31: #{tpu_custom_call.1} parent=5 // pred_region
      %s142 = ssub.s32 %s9, 1
      %p143 = scmp.lt.s32.totalorder %s14, 1
      %s144 = scalar_select %p143, %s14, 1
      %s145 = smul.addr %s144, 32
      %s146 = smul.addr %s145, 8
      %s147 = scalar_lea.vmem %s0, %s146
      %p148 = pneg %p35
      %p149 = pneg %p32
      %p150 = pneg %p56
      %p151 = pneg %p53
      %p152 = pneg %p77
      %p153 = pneg %p74
      %p154 = pneg %p103
      %p155 = pneg %p100
      %p156 = scmp.lt.s32.totalorder %s14, 1
      %s157 = scalar_select %p156, %s14, 1
      %s158 = smul.addr %s157, 2
      %s159 = smul.addr %s158, 8
      %s160 = scalar_lea.vmem %s3, %s159
      %p161 = scmp.lt.s32.totalorder %s14, 1
      %s162 = scalar_select %p161, %s14, 1
      %s163 = smul.addr %s162, 32
      %s164 = smul.addr %s163, 8
      %s165 = scalar_lea.vmem %s0, %s164
      %p166 = scmp.lt.s32.totalorder %s14, 1
      %s167 = scalar_select %p166, %s14, 1
      %s168 = smul.addr %s167, 2
      %s169 = smul.addr %s168, 8
      %s170 = scalar_lea.vmem %s3, %s169
      %v171 = vld [vmem:[%s165] sm:$0xff]
      %v172 = vld [vmem:[%s165 + $0x8] sm:$0xff]
      %v173 = vld [vmem:[%s165 + $0x10] sm:$0xff]
      %v174 = vld [vmem:[%s165 + $0x18] sm:$0xff]
      %v175 = vld [vmem:[%s165 + $0x20] sm:$0xff]
      %v176 = vld [vmem:[%s165 + $0x28] sm:$0xff]
      %v177 = vld [vmem:[%s165 + $0x30] sm:$0x1]
      %v178 = vld [vmem:[%s165 + $0x38] sm:$0x1]
      %v179 = vld [vmem:[%s165 + $0x40] sm:$0xff]
      %v180 = vld [vmem:[%s165 + $0x48] sm:$0xff]
      %v181 = vld [vmem:[%s165 + $0x50] sm:$0xff]
      %v182 = vld [vmem:[%s165 + $0x58] sm:$0xff]
      %v183 = vld [vmem:[%s165 + $0x60] sm:$0xff]
      %v184 = vld [vmem:[%s165 + $0x68] sm:$0xff]
      %v185 = vld [vmem:[%s165 + $0x70] sm:$0x1]
      %v186 = vld [vmem:[%s165 + $0x78] sm:$0x1]
      %v187 = vld [vmem:[%s165 + $0x80] sm:$0xff]
      %v188 = vld [vmem:[%s165 + $0x88] sm:$0xff]
      %v189 = vld [vmem:[%s165 + $0x90] sm:$0xff]
      %v190 = vld [vmem:[%s165 + $0x98] sm:$0xff]
      %v191 = vld [vmem:[%s165 + $0xa0] sm:$0xff]
      %v192 = vld [vmem:[%s165 + $0xa8] sm:$0xff]
      %v193 = vld [vmem:[%s165 + $0xb0] sm:$0x1]
      %v194 = vld [vmem:[%s165 + $0xb8] sm:$0x1]
      %v195 = vld [vmem:[%s165 + $0xc0] sm:$0xff]
      %v196 = vld [vmem:[%s165 + $0xc8] sm:$0xff]
      %v197 = vld [vmem:[%s165 + $0xd0] sm:$0xff]
      %v198 = vld [vmem:[%s165 + $0xd8] sm:$0xff]
      %v199 = vld [vmem:[%s165 + $0xe0] sm:$0xff]
      %v200 = vld [vmem:[%s165 + $0xe8] sm:$0xff]
      %v201 = vld [vmem:[%s165 + $0xf0] sm:$0x1]
      %v202 = vld [vmem:[%s165 + $0xf8] sm:$0x1]
      %v203 = vld [vmem:[%s1] sm:$0x3f]
      %vm204 = vcmask 203776
      %v206 = vsel %vm204, %v203, 0
      %vm208 = vcmask 1040384
      %v210 = vsel %vm208, %v177, 0
      %v213 = vsel %vm208, %v178, 0
      %215 = vmatprep.subr.mxu0 %v172
      %216 = vmatpush1.msra.mxu0 %v171
      %217 = vmatprep.subr.mxu0 %v174
      %218 = vmatpush1.msra.mxu0 %v173
      %219 = vmatprep.subr.mxu0 %v176
      %220 = vmatpush1.msra.mxu0 %v175
      %221 = vmatprep.subr.mxu0 %v213
      %222 = vmatpush1.msra.mxu0 %v210
      %223 = vmatprep.subr.mxu0 0.0
      %224 = vmatpush1.msra.mxu0 0.0
      %225 = vmatprep.subr.mxu0 0.0
      %226 = vmatpush1.msra.mxu0 0.0
      %227 = vmatprep.subr.mxu0 0.0
      %228 = vmatpush1.msra.mxu0 0.0
      %229 = vmatprep.subr.mxu0 0.0
      %230 = vmatpush1.msra.mxu0 0.0
      %231 = vmatprep.subr.mxu0 0.0
      %232 = vmatpush1.msra.mxu0 0.0
      %233 = vmatprep.subr.mxu0 0.0
      %234 = vmatpush1.msra.mxu0 0.0
      %235 = vmatprep.subr.mxu0 0.0
      %236 = vmatpush1.msra.mxu0 0.0
      %237 = vmatprep.subr.mxu0 0.0
      %238 = vmatpush1.msra.mxu0 0.0
      %239 = vmatprep.subr.mxu0 0.0
      %240 = vmatpush1.msra.mxu0 0.0
      %241 = vmatprep.subr.mxu0 0.0
      %242 = vmatpush1.msra.mxu0 0.0
      %243 = vmatprep.subr.mxu0 0.0
      %244 = vmatpush1.msra.mxu0 0.0
      %245 = vmatprep.subr.mxu0 0.0
      %246 = vmatpush1.msra.mxu0 0.0
      %247 = vmatprep.subr.mxu0 0.0
      %248 = vmatpush1.msra.mxu0 0.0
      %249 = vmatprep.subr.mxu0 0.0
      %250 = vmatpush1.msra.mxu0 0.0
      %251 = vmatprep.subr.mxu0 0.0
      %252 = vmatpush1.msra.mxu0 0.0
      %253 = vmatprep.subr.mxu0 0.0
      %254 = vmatpush1.msra.mxu0 0.0
      %255 = vmatprep.subr.mxu0 0.0
      %256 = vmatpush1.msra.mxu0 0.0
      %257 = vmatprep.subr.mxu0 0.0
      %258 = vmatpush1.msra.mxu0 0.0
      %259 = vmatprep.subr.mxu0 0.0
      %260 = vmatpush1.msra.mxu0 0.0
      %261 = vmatprep.subr.mxu0 0.0
      %262 = vmatpush1.msra.mxu0 0.0
      %263 = vmatprep.subr.mxu0 0.0
      %264 = vmatpush1.msra.mxu0 0.0
      %265 = vmatprep.subr.mxu0 0.0
      %266 = vmatpush1.msra.mxu0 0.0
      %267 = vmatprep.subr.mxu0 0.0
      %268 = vmatpush1.msra.mxu0 0.0
      %269 = vmatprep.subr.mxu0 0.0
      %270 = vmatpush1.msra.mxu0 0.0
      %271 = vmatprep.subr.mxu0 0.0
      %272 = vmatpush1.msra.mxu0 0.0
      %273 = vmatprep.subr.mxu0 0.0
      %274 = vmatpush1.msra.mxu0 0.0
      %275 = vmatprep.subr.mxu0 0.0
      %276 = vmatpush1.msra.mxu0 0.0
      %277 = vmatprep.subr.mxu0 0.0
      %278 = vmatpush1.msra.mxu0 0.0
      %279 = vmatprep.mubr.f32.mxu0 0.0
      %280 = vmatmul.mubr.f32.gmra.mrb[0].mxu0 %v206
      %v281 = vpop.f32.mrb[0].mxu0
      %v282 = vadd.f32 0.0, %v281
      %v283 = vpop.f32.mrb[0].mxu0
      %v284 = vadd.f32 0.0, %v283
      %285 = vdwg.mxu0
      %v287 = vsel %vm208, %v185, 0
      %v290 = vsel %vm208, %v186, 0
      %292 = vmatprep.subr.mxu0 %v180
      %293 = vmatpush1.msra.mxu0 %v179
      %294 = vmatprep.subr.mxu0 %v182
      %295 = vmatpush1.msra.mxu0 %v181
      %296 = vmatprep.subr.mxu0 %v184
      %297 = vmatpush1.msra.mxu0 %v183
      %298 = vmatprep.subr.mxu0 %v290
      %299 = vmatpush1.msra.mxu0 %v287
      %300 = vmatprep.subr.mxu0 0.0
      %301 = vmatpush1.msra.mxu0 0.0
      %302 = vmatprep.subr.mxu0 0.0
      %303 = vmatpush1.msra.mxu0 0.0
      %304 = vmatprep.subr.mxu0 0.0
      %305 = vmatpush1.msra.mxu0 0.0
      %306 = vmatprep.subr.mxu0 0.0
      %307 = vmatpush1.msra.mxu0 0.0
      %308 = vmatprep.subr.mxu0 0.0
      %309 = vmatpush1.msra.mxu0 0.0
      %310 = vmatprep.subr.mxu0 0.0
      %311 = vmatpush1.msra.mxu0 0.0
      %312 = vmatprep.subr.mxu0 0.0
      %313 = vmatpush1.msra.mxu0 0.0
      %314 = vmatprep.subr.mxu0 0.0
      %315 = vmatpush1.msra.mxu0 0.0
      %316 = vmatprep.subr.mxu0 0.0
      %317 = vmatpush1.msra.mxu0 0.0
      %318 = vmatprep.subr.mxu0 0.0
      %319 = vmatpush1.msra.mxu0 0.0
      %320 = vmatprep.subr.mxu0 0.0
      %321 = vmatpush1.msra.mxu0 0.0
      %322 = vmatprep.subr.mxu0 0.0
      %323 = vmatpush1.msra.mxu0 0.0
      %324 = vmatprep.subr.mxu0 0.0
      %325 = vmatpush1.msra.mxu0 0.0
      %326 = vmatprep.subr.mxu0 0.0
      %327 = vmatpush1.msra.mxu0 0.0
      %328 = vmatprep.subr.mxu0 0.0
      %329 = vmatpush1.msra.mxu0 0.0
      %330 = vmatprep.subr.mxu0 0.0
      %331 = vmatpush1.msra.mxu0 0.0
      %332 = vmatprep.subr.mxu0 0.0
      %333 = vmatpush1.msra.mxu0 0.0
      %334 = vmatprep.subr.mxu0 0.0
      %335 = vmatpush1.msra.mxu0 0.0
      %336 = vmatprep.subr.mxu0 0.0
      %337 = vmatpush1.msra.mxu0 0.0
      %338 = vmatprep.subr.mxu0 0.0
      %339 = vmatpush1.msra.mxu0 0.0
      %340 = vmatprep.subr.mxu0 0.0
      %341 = vmatpush1.msra.mxu0 0.0
      %342 = vmatprep.subr.mxu0 0.0
      %343 = vmatpush1.msra.mxu0 0.0
      %344 = vmatprep.subr.mxu0 0.0
      %345 = vmatpush1.msra.mxu0 0.0
      %346 = vmatprep.subr.mxu0 0.0
      %347 = vmatpush1.msra.mxu0 0.0
      %348 = vmatprep.subr.mxu0 0.0
      %349 = vmatpush1.msra.mxu0 0.0
      %350 = vmatprep.subr.mxu0 0.0
      %351 = vmatpush1.msra.mxu0 0.0
      %352 = vmatprep.subr.mxu0 0.0
      %353 = vmatpush1.msra.mxu0 0.0
      %354 = vmatprep.subr.mxu0 0.0
      %355 = vmatpush1.msra.mxu0 0.0
      %356 = vmatprep.mubr.f32.mxu0 0.0
      %357 = vmatmul.mubr.f32.gmra.mrb[0].mxu0 %v206
      %v358 = vpop.f32.mrb[0].mxu0
      %v359 = vadd.f32 0.0, %v358
      %v360 = vpop.f32.mrb[0].mxu0
      %v361 = vadd.f32 0.0, %v360
      %362 = vdwg.mxu0
      %v363 = vmax.f32 %v282, %v359
      %v364 = vmax.f32 %v284, %v361
      %v366 = vsel %vm208, %v193, 0
      %v369 = vsel %vm208, %v194, 0
      %371 = vmatprep.subr.mxu0 %v188
      %372 = vmatpush1.msra.mxu0 %v187
      %373 = vmatprep.subr.mxu0 %v190
      %374 = vmatpush1.msra.mxu0 %v189
      %375 = vmatprep.subr.mxu0 %v192
      %376 = vmatpush1.msra.mxu0 %v191
      %377 = vmatprep.subr.mxu0 %v369
      %378 = vmatpush1.msra.mxu0 %v366
      %379 = vmatprep.subr.mxu0 0.0
      %380 = vmatpush1.msra.mxu0 0.0
      %381 = vmatprep.subr.mxu0 0.0
      %382 = vmatpush1.msra.mxu0 0.0
      %383 = vmatprep.subr.mxu0 0.0
      %384 = vmatpush1.msra.mxu0 0.0
      %385 = vmatprep.subr.mxu0 0.0
      %386 = vmatpush1.msra.mxu0 0.0
      %387 = vmatprep.subr.mxu0 0.0
      %388 = vmatpush1.msra.mxu0 0.0
      %389 = vmatprep.subr.mxu0 0.0
      %390 = vmatpush1.msra.mxu0 0.0
      %391 = vmatprep.subr.mxu0 0.0
      %392 = vmatpush1.msra.mxu0 0.0
      %393 = vmatprep.subr.mxu0 0.0
      %394 = vmatpush1.msra.mxu0 0.0
      %395 = vmatprep.subr.mxu0 0.0
      %396 = vmatpush1.msra.mxu0 0.0
      %397 = vmatprep.subr.mxu0 0.0
      %398 = vmatpush1.msra.mxu0 0.0
      %399 = vmatprep.subr.mxu0 0.0
      %400 = vmatpush1.msra.mxu0 0.0
      %401 = vmatprep.subr.mxu0 0.0
      %402 = vmatpush1.msra.mxu0 0.0
      %403 = vmatprep.subr.mxu0 0.0
      %404 = vmatpush1.msra.mxu0 0.0
      %405 = vmatprep.subr.mxu0 0.0
      %406 = vmatpush1.msra.mxu0 0.0
      %407 = vmatprep.subr.mxu0 0.0
      %408 = vmatpush1.msra.mxu0 0.0
      %409 = vmatprep.subr.mxu0 0.0
      %410 = vmatpush1.msra.mxu0 0.0
      %411 = vmatprep.subr.mxu0 0.0
      %412 = vmatpush1.msra.mxu0 0.0
      %413 = vmatprep.subr.mxu0 0.0
      %414 = vmatpush1.msra.mxu0 0.0
      %415 = vmatprep.subr.mxu0 0.0
      %416 = vmatpush1.msra.mxu0 0.0
      %417 = vmatprep.subr.mxu0 0.0
      %418 = vmatpush1.msra.mxu0 0.0
      %419 = vmatprep.subr.mxu0 0.0
      %420 = vmatpush1.msra.mxu0 0.0
      %421 = vmatprep.subr.mxu0 0.0
      %422 = vmatpush1.msra.mxu0 0.0
      %423 = vmatprep.subr.mxu0 0.0
      %424 = vmatpush1.msra.mxu0 0.0
      %425 = vmatprep.subr.mxu0 0.0
      %426 = vmatpush1.msra.mxu0 0.0
      %427 = vmatprep.subr.mxu0 0.0
      %428 = vmatpush1.msra.mxu0 0.0
      %429 = vmatprep.subr.mxu0 0.0
      %430 = vmatpush1.msra.mxu0 0.0
      %431 = vmatprep.subr.mxu0 0.0
      %432 = vmatpush1.msra.mxu0 0.0
      %433 = vmatprep.subr.mxu0 0.0
      %434 = vmatpush1.msra.mxu0 0.0
      %435 = vmatprep.mubr.f32.mxu0 0.0
      %436 = vmatmul.mubr.f32.gmra.mrb[0].mxu0 %v206
      %v437 = vpop.f32.mrb[0].mxu0
      %v438 = vadd.f32 0.0, %v437
      %v439 = vpop.f32.mrb[0].mxu0
      %v440 = vadd.f32 0.0, %v439
      %441 = vdwg.mxu0
      %v442 = vmax.f32 %v363, %v438
      %v443 = vmax.f32 %v364, %v440
      %v445 = vsel %vm208, %v201, 0
      %v448 = vsel %vm208, %v202, 0
      %450 = vmatprep.subr.mxu0 %v196
      %451 = vmatpush1.msra.mxu0 %v195
      %452 = vmatprep.subr.mxu0 %v198
      %453 = vmatpush1.msra.mxu0 %v197
      %454 = vmatprep.subr.mxu0 %v200
      %455 = vmatpush1.msra.mxu0 %v199
      %456 = vmatprep.subr.mxu0 %v448
      %457 = vmatpush1.msra.mxu0 %v445
      %458 = vmatprep.subr.mxu0 0.0
      %459 = vmatpush1.msra.mxu0 0.0
      %460 = vmatprep.subr.mxu0 0.0
      %461 = vmatpush1.msra.mxu0 0.0
      %462 = vmatprep.subr.mxu0 0.0
      %463 = vmatpush1.msra.mxu0 0.0
      %464 = vmatprep.subr.mxu0 0.0
      %465 = vmatpush1.msra.mxu0 0.0
      %466 = vmatprep.subr.mxu0 0.0
      %467 = vmatpush1.msra.mxu0 0.0
      %468 = vmatprep.subr.mxu0 0.0
      %469 = vmatpush1.msra.mxu0 0.0
      %470 = vmatprep.subr.mxu0 0.0
      %471 = vmatpush1.msra.mxu0 0.0
      %472 = vmatprep.subr.mxu0 0.0
      %473 = vmatpush1.msra.mxu0 0.0
      %474 = vmatprep.subr.mxu0 0.0
      %475 = vmatpush1.msra.mxu0 0.0
      %476 = vmatprep.subr.mxu0 0.0
      %477 = vmatpush1.msra.mxu0 0.0
      %478 = vmatprep.subr.mxu0 0.0
      %479 = vmatpush1.msra.mxu0 0.0
      %480 = vmatprep.subr.mxu0 0.0
      %481 = vmatpush1.msra.mxu0 0.0
      %482 = vmatprep.subr.mxu0 0.0
      %483 = vmatpush1.msra.mxu0 0.0
      %484 = vmatprep.subr.mxu0 0.0
      %485 = vmatpush1.msra.mxu0 0.0
      %486 = vmatprep.subr.mxu0 0.0
      %487 = vmatpush1.msra.mxu0 0.0
      %488 = vmatprep.subr.mxu0 0.0
      %489 = vmatpush1.msra.mxu0 0.0
      %490 = vmatprep.subr.mxu0 0.0
      %491 = vmatpush1.msra.mxu0 0.0
      %492 = vmatprep.subr.mxu0 0.0
      %493 = vmatpush1.msra.mxu0 0.0
      %494 = vmatprep.subr.mxu0 0.0
      %495 = vmatpush1.msra.mxu0 0.0
      %496 = vmatprep.subr.mxu0 0.0
      %497 = vmatpush1.msra.mxu0 0.0
      %498 = vmatprep.subr.mxu0 0.0
      %499 = vmatpush1.msra.mxu0 0.0
      %500 = vmatprep.subr.mxu0 0.0
      %501 = vmatpush1.msra.mxu0 0.0
      %502 = vmatprep.subr.mxu0 0.0
      %503 = vmatpush1.msra.mxu0 0.0
      %504 = vmatprep.subr.mxu0 0.0
      %505 = vmatpush1.msra.mxu0 0.0
      %506 = vmatprep.subr.mxu0 0.0
      %507 = vmatpush1.msra.mxu0 0.0
      %508 = vmatprep.subr.mxu0 0.0
      %509 = vmatpush1.msra.mxu0 0.0
      %510 = vmatprep.subr.mxu0 0.0
      %511 = vmatpush1.msra.mxu0 0.0
      %512 = vmatprep.subr.mxu0 0.0
      %513 = vmatpush1.msra.mxu0 0.0
      %514 = vmatprep.mubr.f32.mxu0 0.0
      %515 = vmatmul.mubr.f32.gmra.mrb[0].mxu0 %v206
      %v516 = vpop.f32.mrb[0].mxu0
      %v517 = vadd.f32 0.0, %v516
      %v518 = vpop.f32.mrb[0].mxu0
      %v519 = vadd.f32 0.0, %v518
      %520 = vdwg.mxu0
      %v521 = vmax.f32 %v442, %v517
      %v522 = vmax.f32 %v443, %v519
      %v523 = vld [vmem:[%s2] sm:$0x3f]
      %525 = vset.pattern.permute.xlu0 0
      %526 = vperm.xlu0 %525, %v523
      %v527 = vpop.permute.xlu0 %526
      %v529 = vadd.f32 %v521, %v527
      %v530 = vadd.f32 %v522, %v527
      %v531 = vmax.f32 %v529, 0.0
      %v532 = vmax.f32 %v530, 0.0
      %533 = vst [vmem:[%s170] sm:$0x3f] %v531
      %vm534 = vcmask 553984
      %535 = vst.msk [vmem:[%s170 + $0x8] sm:$0x3f] %vm534, %v532
      %p536 = scmp.lt.s32.totalorder %s14, 1
      %s537 = scalar_select %p536, %s14, 1
      %s538 = smul.addr %s537, 2
      %s539 = smul.addr %s538, 8
      %s540 = scalar_lea.vmem %s3, %s539
      // Predicated region
      $region33: #{tpu_custom_call.1} parent=31 // pred_check
        %p541 = pneg %p100
      $region34: #{tpu_custom_call.1} parent=31 // pred_check_branch
        %543 = sbr.rel (%p541) target = $region36
      $region35: #{tpu_custom_call.1} parent=31 // pred_region
        _
      $region36: #{tpu_custom_call.1} parent=31 // pred_fallthru
        _
    $region32: #{tpu_custom_call.1} parent=5 // pred_fallthru
      _
    %p544 = scmp.le.s32.totalorder 2, %s9
    // Predicated region
    $region37: #{tpu_custom_call.1} parent=5 // pred_check
      %p545 = pneg %p544
    $region38: #{tpu_custom_call.1} parent=5 // pred_check_branch
      %547 = sbr.rel (%p545) target = $region40
    $region39: #{tpu_custom_call.1} parent=5 // pred_region
      %s548 = ssub.s32 %s9, 2
      // Predicated region
      $region41: #{tpu_custom_call.1} parent=39 // pred_check
        %p549 = pneg %p106
      $region42: #{tpu_custom_call.1} parent=39 // pred_check_branch
        %551 = sbr.rel (%p549) target = $region44
      $region43: #{tpu_custom_call.1} parent=39 // pred_region
        %p552 = scmp.lt.s32.totalorder %s15, 1
        %s553 = scalar_select %p552, %s15, 1
        %s554 = smul.addr %s553, 2
        %s555 = smul.addr %s554, 8
        %s556 = scalar_lea.vmem %s3, %s555
      $region44: #{tpu_custom_call.1} parent=39 // pred_fallthru
        _
    $region40: #{tpu_custom_call.1} parent=5 // pred_fallthru
      _
  $region6: #{tpu_custom_call.1} parent=0 // loop_footer
    %s13 = sadd.s32 1, %s9
  $region7: #{tpu_custom_call.1} parent=0 // loop_footer_branch
    %8 = sbr.rel target = $region3
  $region8: #{tpu_custom_call.1} parent=0 // loop_exit
    _

</llo_original>
